<compile_context>
chip_gen: v6e
topology: v6e:2x2x1
jax: 0.10.0
libtpu: 0.0.40
codegen_flags: <defaults>
</compile_context>

<pallas_src>
import functools
import math

import jax
import jax.numpy as jnp
from jax import lax
from jax.experimental import pallas as pl
from jax.experimental.pallas import tpu as pltpu

NUM_HEADS = 4
MODEL_SIZE = 32
HEAD_SIZE = MODEL_SIZE // NUM_HEADS


def _attention_kernel(x_ref, bias_ref, hmask_ref, wqkv_ref, bqkv_ref,
                      wo_ref, bo_ref, out_ref, *,
                      batch_per_block, tq, tk, num_heads, head_size, compute_dtype):
    cd = compute_dtype
    f32 = jnp.float32
    H = num_heads
    S = num_heads * head_size
    rq = batch_per_block * tq          # q rows per head block
    rk = batch_per_block * tk          # k/v rows per head block
    use_approx = jnp.dtype(compute_dtype) != jnp.dtype(jnp.float32)

    # ---- Fused Q/K/V projection: ONE MXU matmul over the stacked [q; k; v] rows. ----
    # (1/sqrt(head_size) is already folded into the Q columns of wqkv / bqkv.)
    x = x_ref[0].astype(cd)                                            # (rq + 2*rk, S)
    p = jnp.dot(x, wqkv_ref[...].astype(cd),
                preferred_element_type=f32) + bqkv_ref[...]            # (rq + 2*rk, 3S)
    qp = p[0:rq, 0:S]                                                  # (rq, S)
    kp = p[rq:rq + rk, S:2 * S]                                        # (rk, S)
    vp = p[rq + rk:rq + 2 * rk, 2 * S:3 * S]                           # (rk, S)

    # ---- Fold (head, batch, time) onto the sublane axis: rows ordered (h, b, t). ----
    # Replication is a sublane concat (no lane slicing); K/V copies are masked to
    # their head's column block so the wide matmuls reproduce per-head contractions.
    def fold(y):
        return jnp.concatenate([y] * H, axis=0)

    hmask = hmask_ref[...]                                             # (H*rk, S)
    qf = fold(qp)                       # unmasked: cross-head terms die via kf mask/bias
    kf = fold(kp) * hmask
    vf = fold(vp) * hmask

    # ---- ONE scores matmul for every (batch, head) block + block-diagonal bias. ----
    s = lax.dot_general(qf.astype(cd), kf.astype(cd),
                        (((1,), (1,)), ((), ())),
                        preferred_element_type=f32)                    # (H*rq, H*rk)
    s = s + bias_ref[0]                 # 0 where kept, -1e30 elsewhere (exp underflows to 0)

    # ---- ONE softmax over the folded (H*rk)-wide lane axis. ----
    m = jnp.max(s, axis=-1, keepdims=True)
    e = jnp.exp(s - m)
    a = e * pl.reciprocal(jnp.sum(e, axis=-1, keepdims=True), approx=use_approx)

    # ---- ONE context matmul; row (h, b, t) has its head-h block, zeros elsewhere. ----
    ctx_w = jnp.dot(a.astype(cd), vf.astype(cd), preferred_element_type=f32)  # (H*rq, S)

    # ---- Un-fold: the H row blocks have disjoint column support, so summing them
    #      reassembles the (b, t, head*dim) context entirely in vregs (no scratch). ----
    ctx = ctx_w[0:rq, :]
    for h in range(1, H):
        ctx = ctx + ctx_w[h * rq:(h + 1) * rq, :]                      # (rq, S)

    # ---- Output projection. ----
    out = jnp.dot(ctx.astype(cd), wo_ref[...].astype(cd),
                  preferred_element_type=f32) + bo_ref[...]
    out_ref[0] = out.astype(out_ref.dtype)


def attention_pallas(q, k, v, mask, params, *,
                     num_batch_blocks=1, compute_dtype=jnp.float32):
    """Fused multi-head attention (torch `Attention.forward` semantics).

    num_batch_blocks: grid steps the batch is split into (default 1 = single fused
      invocation, best at these sizes; if splitting for v7x, also switch the
      dimension_semantics below to (pltpu.CORE_PARALLEL,)).
    compute_dtype: dtype fed to the MXU matmuls (accumulation stays f32).
      jnp.bfloat16 is the fast path on v6e/v7x at looser precision.
    """
    B, Tq, S = q.shape
    Tk = k.shape[1]
    assert S == MODEL_SIZE
    G = num_batch_blocks
    assert B % G == 0, "batch must divide evenly across grid blocks"
    Bc = B // G
    H, hd = NUM_HEADS, HEAD_SIZE
    rq, rk = Bc * Tq, Bc * Tk
    Rq, Rk = H * rq, H * rk
    wq, bq, wk, bk, wv, bv, wo, bo = params

    # ---- Parameter prep: fused QKV weight/bias, 1/sqrt(head_size) folded into Q. ----
    scale = 1.0 / math.sqrt(hd)
    wqkv = jnp.concatenate([wq * scale, wk, wv], axis=1)          # (S, 3S)
    bqkv = jnp.concatenate([bq * scale, bk, bv], axis=1)          # (1, 3S)

    # ---- Layout plumbing: stack q/k/v rows per grid block into one input slab. ----
    qf = q.reshape(G, rq, S)
    kf = k.reshape(G, rk, S)
    vf = v.reshape(G, rk, S)
    x = jnp.concatenate([qf, kf, vf], axis=1)                     # (G, rq + 2*rk, S)

    # ---- Block-diagonal additive bias over the folded (head, batch, time) axes:
    #      keeps (h==h', b==b', mask[b, tq, tk]); everything else gets -1e30. ----
    if mask is None:
        keep = jnp.ones((G, Bc, Tq, Tk), jnp.bool_)
    else:
        keep = mask.reshape(G, Bc, Tq, Tk).astype(jnp.bool_)
    eye_h = jnp.eye(H, dtype=jnp.bool_)
    eye_b = jnp.eye(Bc, dtype=jnp.bool_)
    blk = (keep[:, None, :, :, None, None, :]
           & eye_h[None, :, None, None, :, None, None]
           & eye_b[None, None, :, None, None, :, None])           # (G, H, Bc, Tq, H, Bc, Tk)
    bias = jnp.where(blk, 0.0, -1e30).astype(jnp.float32).reshape(G, Rq, Rk)

    # ---- Head-column mask for the folded K/V rows (row group h keeps head-h cols). ----
    head_mask = (jnp.arange(Rk)[:, None] // rk ==
                 jnp.arange(S)[None, :] // hd).astype(jnp.float32)   # (Rk, S)

    kernel = functools.partial(
        _attention_kernel, batch_per_block=Bc, tq=Tq, tk=Tk,
        num_heads=H, head_size=hd, compute_dtype=compute_dtype)

    out = pl.pallas_call(
        kernel,
        out_shape=jax.ShapeDtypeStruct((G, rq, S), q.dtype),
        grid_spec=pltpu.PrefetchScalarGridSpec(
            num_scalar_prefetch=0,
            grid=(G,),
            in_specs=[pl.BlockSpec((1, rq + 2 * rk, S), lambda g: (g, 0, 0)),
                      pl.BlockSpec((1, Rq, Rk), lambda g: (g, 0, 0)),
                      pl.BlockSpec((Rk, S), lambda g: (0, 0)),
                      pl.BlockSpec((S, 3 * S), lambda g: (0, 0)),
                      pl.BlockSpec((1, 3 * S), lambda g: (0, 0)),
                      pl.BlockSpec((S, S), lambda g: (0, 0)),
                      pl.BlockSpec((1, S), lambda g: (0, 0))],
            out_specs=pl.BlockSpec((1, rq, S), lambda g: (g, 0, 0)),
        ),
        # Use (pltpu.CORE_PARALLEL,) here when splitting the batch across v7x TensorCores.
        compiler_params=pltpu.CompilerParams(dimension_semantics=("arbitrary",)),
    )(x, bias, head_mask, wqkv, bqkv, wo, bo)
    return out.reshape(B, Tq, S)


def attention_ref(q, k, v, mask, params):
    """Pure-JAX reference mirroring the PyTorch forward exactly."""
    wq, bq, wk, bk, wv, bv, wo, bo = params
    B = q.shape[0]

    def split(x):
        return x.reshape(B, -1, NUM_HEADS, HEAD_SIZE).transpose(0, 2, 1, 3)

    qp = split(q @ wq + bq) / math.sqrt(HEAD_SIZE)
    kp = split(k @ wk + bk)
    vp = split(v @ wv + bv)

    scores = jnp.einsum('bhqd,bhkd->bhqk', qp, kp)
    scores = jnp.where(mask[:, None, :, :] > 0, scores, -jnp.inf)
    attn = jax.nn.softmax(scores, axis=-1)
    ctx = jnp.einsum('bhqk,bhkd->bhqd', attn, vp)
    ctx = ctx.transpose(0, 2, 1, 3).reshape(B, -1, MODEL_SIZE)
    return ctx @ wo + bo


def make_params(key, size):
    """Deterministic nn.Linear-style init: U(-1/sqrt(in), 1/sqrt(in)); weights stored (in, out)."""
    keys = jax.random.split(key, 8)
    bound = 1.0 / math.sqrt(size)
    params = []
    for i in range(4):  # q, k, v, output layers
        w = jax.random.uniform(keys[2 * i], (size, size), jnp.float32, -bound, bound)
        b = jax.random.uniform(keys[2 * i + 1], (1, size), jnp.float32, -bound, bound)
        params += [w, b]
    return tuple(params)


if __name__ == "__main__":
    B, Tq, Tk, S = 2, 8, 8, MODEL_SIZE

    root = jax.random.PRNGKey(0)
    kq, kk, kv, kp = jax.random.split(root, 4)

    q = jax.random.normal(kq, (B, Tq, S), jnp.float32)
    k = jax.random.normal(kk, (B, Tk, S), jnp.float32)
    v = jax.random.normal(kv, (B, Tk, S), jnp.float32)

    # Causal mask (no fully-masked row, so softmax stays finite like the torch case).
    causal = jnp.tril(jnp.ones((Tq, Tk), jnp.int32))
    mask = jnp.broadcast_to(causal, (B, Tq, Tk))

    # wq, bq, wk, bk, wv, bv, wo, bo (weights already transposed to (in, out))
    params = make_params(kp, S)

    out = jax.jit(attention_pallas)(q, k, v, mask, params)
    out = jax.block_until_ready(out)

    ref = attention_ref(q, k, v, mask, params)
    assert out.shape == (B, Tq, S)
    assert jnp.allclose(out, ref, atol=1e-4, rtol=1e-4), "mismatch vs pure-JAX reference"

    print("KERNEL_OK")
</pallas_src>

<mosaic_0001>
module attributes {stable_mosaic.version = 11 : i64} {
  func.func @_attention_kernel(%arg0: i32, %arg1: memref<1x48x32xf32, #tpu.memory_space<vmem>>, %arg2: memref<1x64x64xf32, #tpu.memory_space<vmem>>, %arg3: memref<64x32xf32, #tpu.memory_space<vmem>>, %arg4: memref<32x96xf32, #tpu.memory_space<vmem>>, %arg5: memref<1x96xf32, #tpu.memory_space<vmem>>, %arg6: memref<32x32xf32, #tpu.memory_space<vmem>>, %arg7: memref<1x32xf32, #tpu.memory_space<vmem>>, %arg8: memref<1x16x32xf32, #tpu.memory_space<vmem>>) attributes {dimension_semantics = [#tpu.dimension_semantics<arbitrary>], iteration_bounds = array<i64: 1>, scalar_prefetch = 0 : i64, scratch_operands = 0 : i64, tpu.core_type = #tpu.core_type<tc>, window_params = [{transform_indices = @transform_0, window_bounds = array<i64: 1, 48, 32>}, {transform_indices = @transform_1, window_bounds = array<i64: 1, 64, 64>}, {pipeline_mode = #tpu.pipeline_mode<synchronous>, transform_indices = @transform_2, window_bounds = array<i64: 64, 32>}, {pipeline_mode = #tpu.pipeline_mode<synchronous>, transform_indices = @transform_3, window_bounds = array<i64: 32, 96>}, {pipeline_mode = #tpu.pipeline_mode<synchronous>, transform_indices = @transform_4, window_bounds = array<i64: 1, 96>}, {pipeline_mode = #tpu.pipeline_mode<synchronous>, transform_indices = @transform_5, window_bounds = array<i64: 32, 32>}, {pipeline_mode = #tpu.pipeline_mode<synchronous>, transform_indices = @transform_6, window_bounds = array<i64: 1, 32>}, {transform_indices = @transform_7, window_bounds = array<i64: 1, 16, 32>}]} {
    %c0 = arith.constant 0 : index
    %c0_0 = arith.constant 0 : index
    %c0_1 = arith.constant 0 : index
    %0 = vector.load %arg1[%c0, %c0_0, %c0_1] : memref<1x48x32xf32, #tpu.memory_space<vmem>>, vector<1x48x32xf32>
    %1 = vector.shape_cast %0 : vector<1x48x32xf32> to vector<48x32xf32>
    %c0_2 = arith.constant 0 : index
    %c0_3 = arith.constant 0 : index
    %2 = vector.load %arg4[%c0_2, %c0_3] : memref<32x96xf32, #tpu.memory_space<vmem>>, vector<32x96xf32>
    %cst = arith.constant dense<0.000000e+00> : vector<48x96xf32>
    %3 = tpu.matmul %1, %2, %cst {dimension_numbers = #tpu.dot_dimension_numbers<[1], [0], [0], [1], [0, 0, 1, 1], [], []>} : vector<48x32xf32>, vector<32x96xf32>, vector<48x96xf32> -> vector<48x96xf32>
    %c0_4 = arith.constant 0 : index
    %c0_5 = arith.constant 0 : index
    %4 = vector.load %arg5[%c0_4, %c0_5] : memref<1x96xf32, #tpu.memory_space<vmem>>, vector<1x96xf32>
    %5 = vector.broadcast %4 : vector<1x96xf32> to vector<48x96xf32>
    %6 = arith.addf %3, %5 : vector<48x96xf32>
    %7 = vector.extract_strided_slice %6 {offsets = [0, 0], sizes = [16, 32], strides = [1, 1]} : vector<48x96xf32> to vector<16x32xf32>
    %8 = vector.extract_strided_slice %6 {offsets = [16, 32], sizes = [16, 32], strides = [1, 1]} : vector<48x96xf32> to vector<16x32xf32>
    %9 = vector.extract_strided_slice %6 {offsets = [32, 64], sizes = [16, 32], strides = [1, 1]} : vector<48x96xf32> to vector<16x32xf32>
    %c0_6 = arith.constant 0 : index
    %c0_7 = arith.constant 0 : index
    %10 = vector.load %arg3[%c0_6, %c0_7] : memref<64x32xf32, #tpu.memory_space<vmem>>, vector<64x32xf32>
    %11 = tpu.concatenate %7, %7, %7, %7 in 0 : vector<16x32xf32>, vector<16x32xf32>, vector<16x32xf32>, vector<16x32xf32> -> vector<64x32xf32>
    %12 = tpu.concatenate %8, %8, %8, %8 in 0 : vector<16x32xf32>, vector<16x32xf32>, vector<16x32xf32>, vector<16x32xf32> -> vector<64x32xf32>
    %13 = arith.mulf %12, %10 : vector<64x32xf32>
    %14 = tpu.concatenate %9, %9, %9, %9 in 0 : vector<16x32xf32>, vector<16x32xf32>, vector<16x32xf32>, vector<16x32xf32> -> vector<64x32xf32>
    %15 = arith.mulf %14, %10 : vector<64x32xf32>
    %cst_8 = arith.constant dense<0.000000e+00> : vector<64x64xf32>
    %16 = tpu.matmul %11, %13, %cst_8 {dimension_numbers = #tpu.dot_dimension_numbers<[1], [1], [0], [0], [0, 0, 1, 0], [], []>} : vector<64x32xf32>, vector<64x32xf32>, vector<64x64xf32> -> vector<64x64xf32>
    %c0_9 = arith.constant 0 : index
    %c0_10 = arith.constant 0 : index
    %c0_11 = arith.constant 0 : index
    %17 = vector.load %arg2[%c0_9, %c0_10, %c0_11] : memref<1x64x64xf32, #tpu.memory_space<vmem>>, vector<1x64x64xf32>
    %18 = vector.shape_cast %17 : vector<1x64x64xf32> to vector<64x64xf32>
    %19 = arith.addf %16, %18 : vector<64x64xf32>
    %cst_12 = arith.constant dense<0xFF800000> : vector<64xf32>
    %20 = vector.multi_reduction <maximumf>, %19, %cst_12 [1] : vector<64x64xf32> to vector<64xf32>
    %21 = vector.shape_cast %20 : vector<64xf32> to vector<64x1xf32>
    %22 = vector.broadcast %21 : vector<64x1xf32> to vector<64x64xf32>
    %23 = arith.subf %19, %22 : vector<64x64xf32>
    %24 = math.exp %23 : vector<64x64xf32>
    %cst_13 = arith.constant dense<0.000000e+00> : vector<64xf32>
    %25 = vector.multi_reduction <add>, %24, %cst_13 [1] : vector<64x64xf32> to vector<64xf32>
    %26 = vector.shape_cast %25 : vector<64xf32> to vector<64x1xf32>
    %27 = tpu.reciprocal %26 : vector<64x1xf32> -> vector<64x1xf32>
    %28 = vector.broadcast %27 : vector<64x1xf32> to vector<64x64xf32>
    %29 = arith.mulf %24, %28 : vector<64x64xf32>
    %cst_14 = arith.constant dense<0.000000e+00> : vector<64x32xf32>
    %30 = tpu.matmul %29, %15, %cst_14 {dimension_numbers = #tpu.dot_dimension_numbers<[1], [0], [0], [1], [0, 0, 1, 1], [], []>} : vector<64x64xf32>, vector<64x32xf32>, vector<64x32xf32> -> vector<64x32xf32>
    %31 = vector.extract_strided_slice %30 {offsets = [0, 0], sizes = [16, 32], strides = [1, 1]} : vector<64x32xf32> to vector<16x32xf32>
    %32 = vector.extract_strided_slice %30 {offsets = [16, 0], sizes = [16, 32], strides = [1, 1]} : vector<64x32xf32> to vector<16x32xf32>
    %33 = arith.addf %31, %32 : vector<16x32xf32>
    %34 = vector.extract_strided_slice %30 {offsets = [32, 0], sizes = [16, 32], strides = [1, 1]} : vector<64x32xf32> to vector<16x32xf32>
    %35 = arith.addf %33, %34 : vector<16x32xf32>
    %36 = vector.extract_strided_slice %30 {offsets = [48, 0], sizes = [16, 32], strides = [1, 1]} : vector<64x32xf32> to vector<16x32xf32>
    %37 = arith.addf %35, %36 : vector<16x32xf32>
    %c0_15 = arith.constant 0 : index
    %c0_16 = arith.constant 0 : index
    %38 = vector.load %arg6[%c0_15, %c0_16] : memref<32x32xf32, #tpu.memory_space<vmem>>, vector<32x32xf32>
    %cst_17 = arith.constant dense<0.000000e+00> : vector<16x32xf32>
    %39 = tpu.matmul %37, %38, %cst_17 {dimension_numbers = #tpu.dot_dimension_numbers<[1], [0], [0], [1], [0, 0, 1, 1], [], []>} : vector<16x32xf32>, vector<32x32xf32>, vector<16x32xf32> -> vector<16x32xf32>
    %c0_18 = arith.constant 0 : index
    %c0_19 = arith.constant 0 : index
    %40 = vector.load %arg7[%c0_18, %c0_19] : memref<1x32xf32, #tpu.memory_space<vmem>>, vector<1x32xf32>
    %41 = vector.broadcast %40 : vector<1x32xf32> to vector<16x32xf32>
    %42 = arith.addf %39, %41 : vector<16x32xf32>
    %c0_20 = arith.constant 0 : index
    %c0_21 = arith.constant 0 : index
    %c0_22 = arith.constant 0 : index
    %43 = vector.load %arg8[%c0_20, %c0_21, %c0_22] : memref<1x16x32xf32, #tpu.memory_space<vmem>>, vector<1x16x32xf32>
    %44 = vector.shape_cast %43 : vector<1x16x32xf32> to vector<16x32xf32>
    %45 = vector.shape_cast %42 : vector<16x32xf32> to vector<1x16x32xf32>
    tpu.vector_store %arg8[%c0_20, %c0_21, %c0_22], %45 {strides = array<i32>} : memref<1x16x32xf32, #tpu.memory_space<vmem>>, vector<1x16x32xf32>,
    return
  }
  func.func @transform_0(%arg0: i32) -> (i32, i32, i32) {
    %c0_i32 = arith.constant 0 : i32
    %c0_i32_0 = arith.constant 0 : i32
    %c0_i32_1 = arith.constant 0 : i32
    return %arg0, %c0_i32, %c0_i32_0 : i32, i32, i32
  }
  func.func @transform_1(%arg0: i32) -> (i32, i32, i32) {
    %c0_i32 = arith.constant 0 : i32
    %c0_i32_0 = arith.constant 0 : i32
    %c0_i32_1 = arith.constant 0 : i32
    return %arg0, %c0_i32, %c0_i32_0 : i32, i32, i32
  }
  func.func @transform_2(%arg0: i32) -> (i32, i32) {
    %c0_i32 = arith.constant 0 : i32
    %c0_i32_0 = arith.constant 0 : i32
    %c0_i32_1 = arith.constant 0 : i32
    return %c0_i32, %c0_i32_0 : i32, i32
  }
  func.func @transform_3(%arg0: i32) -> (i32, i32) {
    %c0_i32 = arith.constant 0 : i32
    %c0_i32_0 = arith.constant 0 : i32
    %c0_i32_1 = arith.constant 0 : i32
    return %c0_i32, %c0_i32_0 : i32, i32
  }
  func.func @transform_4(%arg0: i32) -> (i32, i32) {
    %c0_i32 = arith.constant 0 : i32
    %c0_i32_0 = arith.constant 0 : i32
    %c0_i32_1 = arith.constant 0 : i32
    return %c0_i32, %c0_i32_0 : i32, i32
  }
  func.func @transform_5(%arg0: i32) -> (i32, i32) {
    %c0_i32 = arith.constant 0 : i32
    %c0_i32_0 = arith.constant 0 : i32
    %c0_i32_1 = arith.constant 0 : i32
    return %c0_i32, %c0_i32_0 : i32, i32
  }
  func.func @transform_6(%arg0: i32) -> (i32, i32) {
    %c0_i32 = arith.constant 0 : i32
    %c0_i32_0 = arith.constant 0 : i32
    %c0_i32_1 = arith.constant 0 : i32
    return %c0_i32, %c0_i32_0 : i32, i32
  }
  func.func @transform_7(%arg0: i32) -> (i32, i32, i32) {
    %c0_i32 = arith.constant 0 : i32
    %c0_i32_0 = arith.constant 0 : i32
    %c0_i32_1 = arith.constant 0 : i32
    return %arg0, %c0_i32, %c0_i32_0 : i32, i32, i32
  }
}

</mosaic_0001>

<llo_original>
// kernel: attention_pallas.1
$region0: #{attention_pallas.1}
  #allocation0 [shape = 'u32[]', space=smem, size = 0x4, offset = 0x4, fixed_abs, tag = 'smem constant byte address 0x4 - core index']
  #allocation1 [shape = 'u32[144,128]{1,0:T(1,128)}', space=vmem, size = 0x12000, scoped, tag = 'internal scratch']
  %s0 = inlined_call_operand.vmem [shape: f32[1,48,32], index: 0, kind: input, shape index: {}]
  %s1 = inlined_call_operand.vmem [shape: f32[1,64,64], index: 1, kind: input, shape index: {}]
  %s2 = inlined_call_operand.vmem [shape: f32[64,32], index: 2, kind: input, shape index: {}]
  %s3 = inlined_call_operand.vmem [shape: f32[32,96], index: 3, kind: input, shape index: {}]
  %s4 = inlined_call_operand.vmem [shape: f32[1,96], index: 4, kind: input, shape index: {}]
  %s5 = inlined_call_operand.vmem [shape: f32[32,32], index: 5, kind: input, shape index: {}]
  %s6 = inlined_call_operand.vmem [shape: f32[1,32], index: 6, kind: input, shape index: {}]
  %s7 = inlined_call_operand.hbm [shape: f32[1,16,32], index: 7, kind: output, shape index: {}]
  %s8 = sld [smem:[#allocation0]]
  $region38: #{attention_pallas.1} parent=0
    _
  %s10 = ssub.s32 1, %s8
  %s11 = scalar_select 0, %s10, %s8
  $region1: #{attention_pallas.1} parent=0
    #allocation2 [shape = 'u8[8192]{0}', space=vmem, size = 0x2000, scoped, tag = 'output window, operand 0, single buffered']
    #allocation3 [shape = 's32[1]{0}', space=sflag, size = 0x4, scoped, tag = 'scoped memory for attention_pallas.1']
    %12 = vsyncpa [#allocation3], 0
    // Predicated region
    $region2: #{attention_pallas.1} parent=1 // pred_check
      _
    $region3: #{attention_pallas.1} parent=1 // pred_check_branch
      %14 = sbr.rel (0) target = $region5
    $region4: #{attention_pallas.1} parent=1 // pred_region
      _
    $region5: #{attention_pallas.1} parent=1 // pred_fallthru
      _
    // Predicated region
    $region6: #{attention_pallas.1} parent=1 // pred_check
      _
    $region7: #{attention_pallas.1} parent=1 // pred_check_branch
      %16 = sbr.rel (0) target = $region9
    $region8: #{attention_pallas.1} parent=1 // pred_region
      _
    $region9: #{attention_pallas.1} parent=1 // pred_fallthru
      _
    // Predicated region
    $region10: #{attention_pallas.1} parent=1 // pred_check
      _
    $region11: #{attention_pallas.1} parent=1 // pred_check_branch
      %18 = sbr.rel (0) target = $region13
    $region12: #{attention_pallas.1} parent=1 // pred_region
      _
    $region13: #{attention_pallas.1} parent=1 // pred_fallthru
      _
    // Predicated region
    $region14: #{attention_pallas.1} parent=1 // pred_check
      _
    $region15: #{attention_pallas.1} parent=1 // pred_check_branch
      %20 = sbr.rel (0) target = $region17
    $region16: #{attention_pallas.1} parent=1 // pred_region
      _
    $region17: #{attention_pallas.1} parent=1 // pred_fallthru
      _
    // Predicated region
    $region18: #{attention_pallas.1} parent=1 // pred_check
      _
    $region19: #{attention_pallas.1} parent=1 // pred_check_branch
      %22 = sbr.rel (0) target = $region21
    $region20: #{attention_pallas.1} parent=1 // pred_region
      _
    $region21: #{attention_pallas.1} parent=1 // pred_fallthru
      _
    // Predicated region
    $region22: #{attention_pallas.1} parent=1 // pred_check
      _
    $region23: #{attention_pallas.1} parent=1 // pred_check_branch
      %24 = sbr.rel (0) target = $region25
    $region24: #{attention_pallas.1} parent=1 // pred_region
      _
    $region25: #{attention_pallas.1} parent=1 // pred_fallthru
      _
    // Predicated region
    $region26: #{attention_pallas.1} parent=1 // pred_check
      _
    $region27: #{attention_pallas.1} parent=1 // pred_check_branch
      %26 = sbr.rel (0) target = $region29
    $region28: #{attention_pallas.1} parent=1 // pred_region
      _
    $region29: #{attention_pallas.1} parent=1 // pred_fallthru
      _
    %v27 = vld [vmem:[%s0] sm:$0xff]
    %v28 = vld [vmem:[%s0 + $0x8] sm:$0xff]
    %v29 = vld [vmem:[%s0 + $0x10] sm:$0xff]
    %v30 = vld [vmem:[%s0 + $0x18] sm:$0xff]
    %v31 = vld [vmem:[%s0 + $0x20] sm:$0xff]
    %v32 = vld [vmem:[%s0 + $0x28] sm:$0xff]
    %v33 = vld [vmem:[%s3] sm:$0xff]
    %v34 = vld [vmem:[%s3 + $0x8] sm:$0xff]
    %v35 = vld [vmem:[%s3 + $0x10] sm:$0xff]
    %v36 = vld [vmem:[%s3 + $0x18] sm:$0xff]
    %v37 = vld [vmem:[%s4] sm:$0x1]
    %v39 = vlaneseq
    %v40 = vshrl.u32 %v39, 7
    %v41 = vsub.s32 0, %v40
    %v42 = vrot.slane %v37, %v41
    %vm44 = vcmask 261120
    %v46 = vsel %vm44, %v27, 0
    %v49 = vsel %vm44, %v28, 0
    %v52 = vsel %vm44, %v29, 0
    %v55 = vsel %vm44, %v30, 0
    %v58 = vsel %vm44, %v31, 0
    %v61 = vsel %vm44, %v32, 0
    %63 = vmatprep.subr.mxu0 0.0
    %64 = vmatpush1.msra.mxu0 0.0
    %65 = vmatprep.subr.mxu0 0.0
    %66 = vmatpush1.msra.mxu0 0.0
    %67 = vmatprep.subr.mxu0 0.0
    %68 = vmatpush1.msra.mxu0 0.0
    %69 = vmatprep.subr.mxu0 0.0
    %70 = vmatpush1.msra.mxu0 0.0
    %71 = vmatprep.subr.mxu0 0.0
    %72 = vmatpush1.msra.mxu0 0.0
    %73 = vmatprep.subr.mxu0 0.0
    %74 = vmatpush1.msra.mxu0 0.0
    %75 = vmatprep.subr.mxu0 0.0
    %76 = vmatpush1.msra.mxu0 0.0
    %77 = vmatprep.subr.mxu0 0.0
    %78 = vmatpush1.msra.mxu0 0.0
    %79 = vmatprep.subr.mxu0 0.0
    %80 = vmatpush1.msra.mxu0 0.0
    %81 = vmatprep.subr.mxu0 0.0
    %82 = vmatpush1.msra.mxu0 0.0
    %83 = vmatprep.subr.mxu0 0.0
    %84 = vmatpush1.msra.mxu0 0.0
    %85 = vmatprep.subr.mxu0 0.0
    %86 = vmatpush1.msra.mxu0 0.0
    %87 = vmatprep.subr.mxu0 0.0
    %88 = vmatpush1.msra.mxu0 %v36
    %89 = vmatprep.subr.mxu0 0.0
    %90 = vmatpush1.msra.mxu0 %v35
    %91 = vmatprep.subr.mxu0 0.0
    %92 = vmatpush1.msra.mxu0 %v34
    %93 = vmatprep.subr.mxu0 0.0
    %94 = vmatpush1.msra.mxu0 %v33
    %95 = vmatprep.subr.mxu0 0.0
    %96 = vmatpush2.msra.mxu0 0.0
    %97 = vmatprep.subr.mxu0 0.0
    %98 = vmatpush2.msra.mxu0 0.0
    %99 = vmatprep.subr.mxu0 0.0
    %100 = vmatpush2.msra.mxu0 0.0
    %101 = vmatprep.subr.mxu0 0.0
    %102 = vmatpush2.msra.mxu0 0.0
    %103 = vmatprep.subr.mxu0 0.0
    %104 = vmatpush2.msra.mxu0 0.0
    %105 = vmatprep.subr.mxu0 0.0
    %106 = vmatpush2.msra.mxu0 0.0
    %107 = vmatprep.subr.mxu0 0.0
    %108 = vmatpush2.msra.mxu0 0.0
    %109 = vmatprep.subr.mxu0 0.0
    %110 = vmatpush2.msra.mxu0 0.0
    %111 = vmatprep.subr.mxu0 0.0
    %112 = vmatpush2.msra.mxu0 0.0
    %113 = vmatprep.subr.mxu0 0.0
    %114 = vmatpush2.msra.mxu0 0.0
    %115 = vmatprep.subr.mxu0 0.0
    %116 = vmatpush2.msra.mxu0 0.0
    %117 = vmatprep.subr.mxu0 0.0
    %118 = vmatpush2.msra.mxu0 0.0
    %119 = vmatprep.subr.mxu0 0.0
    %120 = vmatpush2.msra.mxu0 0.0
    %121 = vmatprep.subr.mxu0 0.0
    %122 = vmatpush2.msra.mxu0 0.0
    %123 = vmatprep.subr.mxu0 0.0
    %124 = vmatpush2.msra.mxu0 0.0
    %125 = vmatprep.subr.mxu0 0.0
    %126 = vmatpush2.msra.mxu0 0.0
    %127 = vmatprep.mubr.f32.mxu0 0.0
    %128 = vmatmul.mubr.f32.gmra.mxu0 %v46
    %v129 = vpop.f32.mrf.mxu0
    %v130 = vadd.f32 %v42, %v129
    %v131 = vpop.f32.mrf.mxu0
    %132 = vmatprep.mubr.f32.mxu0 0.0
    %133 = vmatmul.mubr.f32.gmra.mxu0 %v49
    %v134 = vpop.f32.mrf.mxu0
    %v135 = vadd.f32 %v42, %v134
    %v136 = vpop.f32.mrf.mxu0
    %137 = vmatprep.mubr.f32.mxu0 0.0
    %138 = vmatmul.mubr.f32.gmra.mxu0 %v52
    %v139 = vpop.f32.mrf.mxu0
    %v140 = vadd.f32 %v42, %v139
    %v141 = vpop.f32.mrf.mxu0
    %142 = vmatprep.mubr.f32.mxu0 0.0
    %143 = vmatmul.mubr.f32.gmra.mxu0 %v55
    %v144 = vpop.f32.mrf.mxu0
    %v145 = vadd.f32 %v42, %v144
    %v146 = vpop.f32.mrf.mxu0
    %147 = vmatprep.mubr.f32.mxu0 0.0
    %148 = vmatmul.mubr.f32.gmra.mxu0 %v58
    %v149 = vpop.f32.mrf.mxu0
    %v150 = vadd.f32 %v42, %v149
    %v151 = vpop.f32.mrf.mxu0
    %152 = vmatprep.mubr.f32.mxu0 0.0
    %153 = vmatmul.mubr.f32.gmra.mxu0 %v61
    %v154 = vpop.f32.mrf.mxu0
    %v155 = vadd.f32 %v42, %v154
    %v156 = vpop.f32.mrf.mxu0
    %157 = vdwg.mxu0
    %v158 = vld [vmem:[%s2] sm:$0xff]
    %v159 = vld [vmem:[%s2 + $0x8] sm:$0xff]
    %v160 = vld [vmem:[%s2 + $0x10] sm:$0xff]
    %v161 = vld [vmem:[%s2 + $0x18] sm:$0xff]
    %v162 = vld [vmem:[%s2 + $0x20] sm:$0xff]
    %v163 = vld [vmem:[%s2 + $0x28] sm:$0xff]
    %v164 = vld [vmem:[%s2 + $0x30] sm:$0xff]
    %v165 = vld [vmem:[%s2 + $0x38] sm:$0xff]
    %174 = vrot.lane.b32.xlu0 %v158, 32
    %v175 = vpop.permute.xlu0 %174
    %176 = vrot.lane.b32.xlu0 %v159, 32
    %v177 = vpop.permute.xlu0 %176
    %178 = vrot.lane.b32.xlu0 %v160, 32
    %v179 = vpop.permute.xlu0 %178
    %180 = vrot.lane.b32.xlu0 %v161, 32
    %v181 = vpop.permute.xlu0 %180
    %182 = vrot.lane.b32.xlu0 %v162, 32
    %v183 = vpop.permute.xlu0 %182
    %184 = vrot.lane.b32.xlu0 %v163, 32
    %v185 = vpop.permute.xlu0 %184
    %186 = vrot.lane.b32.xlu0 %v164, 32
    %v187 = vpop.permute.xlu0 %186
    %188 = vrot.lane.b32.xlu0 %v165, 32
    %v189 = vpop.permute.xlu0 %188
    %v198 = vmul.f32 %v140, %v175
    %v199 = vmul.f32 %v145, %v177
    %v200 = vmul.f32 %v140, %v179
    %v201 = vmul.f32 %v145, %v181
    %v202 = vmul.f32 %v140, %v183
    %v203 = vmul.f32 %v145, %v185
    %v204 = vmul.f32 %v140, %v187
    %v205 = vmul.f32 %v145, %v189
    %206 = vrot.lane.b32.xlu0 %v158, 64
    %v207 = vpop.permute.xlu0 %206
    %208 = vrot.lane.b32.xlu0 %v159, 64
    %v209 = vpop.permute.xlu0 %208
    %210 = vrot.lane.b32.xlu0 %v160, 64
    %v211 = vpop.permute.xlu0 %210
    %212 = vrot.lane.b32.xlu0 %v161, 64
    %v213 = vpop.permute.xlu0 %212
    %214 = vrot.lane.b32.xlu0 %v162, 64
    %v215 = vpop.permute.xlu0 %214
    %216 = vrot.lane.b32.xlu0 %v163, 64
    %v217 = vpop.permute.xlu0 %216
    %218 = vrot.lane.b32.xlu0 %v164, 64
    %v219 = vpop.permute.xlu0 %218
    %220 = vrot.lane.b32.xlu0 %v165, 64
    %v221 = vpop.permute.xlu0 %220
    %v230 = vmul.f32 %v150, %v207
    %v231 = vmul.f32 %v155, %v209
    %v232 = vmul.f32 %v150, %v211
    %v233 = vmul.f32 %v155, %v213
    %v234 = vmul.f32 %v150, %v215
    %v235 = vmul.f32 %v155, %v217
    %v236 = vmul.f32 %v150, %v219
    %v237 = vmul.f32 %v155, %v221
    %v238 = vld [vmem:[%s1] sm:$0xff]
    %v239 = vld [vmem:[%s1 + $0x8] sm:$0xff]
    %v240 = vld [vmem:[%s1 + $0x10] sm:$0xff]
    %v241 = vld [vmem:[%s1 + $0x18] sm:$0xff]
    %v242 = vld [vmem:[%s1 + $0x20] sm:$0xff]
    %v243 = vld [vmem:[%s1 + $0x28] sm:$0xff]
    %v244 = vld [vmem:[%s1 + $0x30] sm:$0xff]
    %v245 = vld [vmem:[%s1 + $0x38] sm:$0xff]
    %254 = vrot.lane.b32.xlu0 %v198, 96
    %v255 = vpop.permute.xlu0 %254
    %256 = vrot.lane.b32.xlu0 %v199, 96
    %v257 = vpop.permute.xlu0 %256
    %258 = vrot.lane.b32.xlu0 %v200, 96
    %v259 = vpop.permute.xlu0 %258
    %260 = vrot.lane.b32.xlu0 %v201, 96
    %v261 = vpop.permute.xlu0 %260
    %262 = vrot.lane.b32.xlu0 %v202, 96
    %v263 = vpop.permute.xlu0 %262
    %264 = vrot.lane.b32.xlu0 %v203, 96
    %v265 = vpop.permute.xlu0 %264
    %266 = vrot.lane.b32.xlu0 %v204, 96
    %v267 = vpop.permute.xlu0 %266
    %268 = vrot.lane.b32.xlu0 %v205, 96
    %v269 = vpop.permute.xlu0 %268
    %v271 = vsel %vm44, %v130, 0
    %v274 = vsel %vm44, %v135, 0
    %v276 = vsel %vm44, %v255, 0
    %v278 = vsel %vm44, %v257, 0
    %v280 = vsel %vm44, %v259, 0
    %v282 = vsel %vm44, %v261, 0
    %v284 = vsel %vm44, %v263, 0
    %v286 = vsel %vm44, %v265, 0
    %v288 = vsel %vm44, %v267, 0
    %v290 = vsel %vm44, %v269, 0
    %292 = vmatprep.subr.mxu0 0.0
    %293 = vmatpush1.xpose.msra.mxu0 0.0
    %294 = vmatprep.subr.mxu0 0.0
    %295 = vmatpush1.xpose.msra.mxu0 0.0
    %296 = vmatprep.subr.mxu0 0.0
    %297 = vmatpush1.xpose.msra.mxu0 0.0
    %298 = vmatprep.subr.mxu0 0.0
    %299 = vmatpush1.xpose.msra.mxu0 0.0
    %300 = vmatprep.subr.mxu0 0.0
    %301 = vmatpush1.xpose.msra.mxu0 0.0
    %302 = vmatprep.subr.mxu0 0.0
    %303 = vmatpush1.xpose.msra.mxu0 0.0
    %304 = vmatprep.subr.mxu0 0.0
    %305 = vmatpush1.xpose.msra.mxu0 0.0
    %306 = vmatprep.subr.mxu0 0.0
    %307 = vmatpush1.xpose.msra.mxu0 0.0
    %308 = vmatprep.subr.mxu0 0.0
    %309 = vmatpush1.xpose.msra.mxu0 %v290
    %310 = vmatprep.subr.mxu0 0.0
    %311 = vmatpush1.xpose.msra.mxu0 %v288
    %312 = vmatprep.subr.mxu0 0.0
    %313 = vmatpush1.xpose.msra.mxu0 %v286
    %314 = vmatprep.subr.mxu0 0.0
    %315 = vmatpush1.xpose.msra.mxu0 %v284
    %316 = vmatprep.subr.mxu0 0.0
    %317 = vmatpush1.xpose.msra.mxu0 %v282
    %318 = vmatprep.subr.mxu0 0.0
    %319 = vmatpush1.xpose.msra.mxu0 %v280
    %320 = vmatprep.subr.mxu0 0.0
    %321 = vmatpush1.xpose.msra.mxu0 %v278
    %322 = vmatprep.subr.mxu0 0.0
    %323 = vmatpush1.xpose.msra.mxu0 %v276
    %324 = vmatprep.subr.mxu0 0.0
    %325 = vmatpush2.xpose.msra.mxu0 0.0
    %326 = vmatprep.subr.mxu0 0.0
    %327 = vmatpush2.xpose.msra.mxu0 0.0
    %328 = vmatprep.subr.mxu0 0.0
    %329 = vmatpush2.xpose.msra.mxu0 0.0
    %330 = vmatprep.subr.mxu0 0.0
    %331 = vmatpush2.xpose.msra.mxu0 0.0
    %332 = vmatprep.subr.mxu0 0.0
    %333 = vmatpush2.xpose.msra.mxu0 0.0
    %334 = vmatprep.subr.mxu0 0.0
    %335 = vmatpush2.xpose.msra.mxu0 0.0
    %336 = vmatprep.subr.mxu0 0.0
    %337 = vmatpush2.xpose.msra.mxu0 0.0
    %338 = vmatprep.subr.mxu0 0.0
    %339 = vmatpush2.xpose.msra.mxu0 0.0
    %340 = vmatprep.subr.mxu0 0.0
    %341 = vmatpush2.xpose.msra.mxu0 0.0
    %342 = vmatprep.subr.mxu0 0.0
    %343 = vmatpush2.xpose.msra.mxu0 0.0
    %344 = vmatprep.subr.mxu0 0.0
    %345 = vmatpush2.xpose.msra.mxu0 0.0
    %346 = vmatprep.subr.mxu0 0.0
    %347 = vmatpush2.xpose.msra.mxu0 0.0
    %348 = vmatprep.subr.mxu0 0.0
    %349 = vmatpush2.xpose.msra.mxu0 0.0
    %350 = vmatprep.subr.mxu0 0.0
    %351 = vmatpush2.xpose.msra.mxu0 0.0
    %352 = vmatprep.subr.mxu0 0.0
    %353 = vmatpush2.xpose.msra.mxu0 0.0
    %354 = vmatprep.subr.mxu0 0.0
    %355 = vmatpush2.xpose.msra.mxu0 0.0
    %356 = vmatprep.mubr.f32.mxu0 0.0
    %357 = vmatmul.mubr.f32.gmra.mxu0 %v271
    %v358 = vpop.f32.mrf.mxu0
    %v359 = vadd.f32 %v238, %v358
    %v360 = vpop.f32.mrf.mxu0
    %361 = vmatprep.mubr.f32.mxu0 0.0
    %362 = vmatmul.mubr.f32.gmra.mxu0 %v274
    %v363 = vpop.f32.mrf.mxu0
    %v364 = vadd.f32 %v239, %v363
    %v365 = vpop.f32.mrf.mxu0
    %366 = vmatprep.mubr.f32.mxu0 0.0
    %367 = vmatmul.mubr.f32.gmra.mxu0 %v271
    %v368 = vpop.f32.mrf.mxu0
    %v369 = vadd.f32 %v240, %v368
    %v370 = vpop.f32.mrf.mxu0
    %371 = vmatprep.mubr.f32.mxu0 0.0
    %372 = vmatmul.mubr.f32.gmra.mxu0 %v274
    %v373 = vpop.f32.mrf.mxu0
    %v374 = vadd.f32 %v241, %v373
    %v375 = vpop.f32.mrf.mxu0
    %376 = vmatprep.mubr.f32.mxu0 0.0
    %377 = vmatmul.mubr.f32.gmra.mxu0 %v271
    %v378 = vpop.f32.mrf.mxu0
    %v379 = vadd.f32 %v242, %v378
    %v380 = vpop.f32.mrf.mxu0
    %381 = vmatprep.mubr.f32.mxu0 0.0
    %382 = vmatmul.mubr.f32.gmra.mxu0 %v274
    %v383 = vpop.f32.mrf.mxu0
    %v384 = vadd.f32 %v243, %v383
    %v385 = vpop.f32.mrf.mxu0
    %386 = vmatprep.mubr.f32.mxu0 0.0
    %387 = vmatmul.mubr.f32.gmra.mxu0 %v271
    %v388 = vpop.f32.mrf.mxu0
    %v389 = vadd.f32 %v244, %v388
    %v390 = vpop.f32.mrf.mxu0
    %391 = vmatprep.mubr.f32.mxu0 0.0
    %392 = vmatmul.mubr.f32.gmra.mxu0 %v274
    %v393 = vpop.f32.mrf.mxu0
    %v394 = vadd.f32 %v245, %v393
    %v395 = vpop.f32.mrf.mxu0
    %396 = vdwg.mxu0
    %vm397 = vcmask 523264
    %v398 = vsel %vm397, %v359, -inf
    %399 = vmax.xlane.f32.xlu0 %v398
    %v400 = vpop.xlane.xlu0 %399
    %v401 = vsel %vm397, %v364, -inf
    %402 = vmax.xlane.f32.xlu0 %v401
    %v403 = vpop.xlane.xlu0 %402
    %v404 = vsel %vm397, %v369, -inf
    %405 = vmax.xlane.f32.xlu0 %v404
    %v406 = vpop.xlane.xlu0 %405
    %v407 = vsel %vm397, %v374, -inf
    %408 = vmax.xlane.f32.xlu0 %v407
    %v409 = vpop.xlane.xlu0 %408
    %v410 = vsel %vm397, %v379, -inf
    %411 = vmax.xlane.f32.xlu0 %v410
    %v412 = vpop.xlane.xlu0 %411
    %v413 = vsel %vm397, %v384, -inf
    %414 = vmax.xlane.f32.xlu0 %v413
    %v415 = vpop.xlane.xlu0 %414
    %v416 = vsel %vm397, %v389, -inf
    %417 = vmax.xlane.f32.xlu0 %v416
    %v418 = vpop.xlane.xlu0 %417
    %v419 = vsel %vm397, %v394, -inf
    %420 = vmax.xlane.f32.xlu0 %v419
    %v421 = vpop.xlane.xlu0 %420
    %v422 = vsub.f32 %v359, %v400
    %v423 = vsub.f32 %v364, %v403
    %v424 = vsub.f32 %v369, %v406
    %v425 = vsub.f32 %v374, %v409
    %v426 = vsub.f32 %v379, %v412
    %v427 = vsub.f32 %v384, %v415
    %v428 = vsub.f32 %v389, %v418
    %v429 = vsub.f32 %v394, %v421
    %v430 = vmul.f32 %v422, 1.442695
    %v431 = vpow.pop %v430
    %v432 = vmul.f32 %v423, 1.442695
    %v433 = vpow.pop %v432
    %v434 = vmul.f32 %v424, 1.442695
    %v435 = vpow.pop %v434
    %v436 = vmul.f32 %v425, 1.442695
    %v437 = vpow.pop %v436
    %v438 = vmul.f32 %v426, 1.442695
    %v439 = vpow.pop %v438
    %v440 = vmul.f32 %v427, 1.442695
    %v441 = vpow.pop %v440
    %v442 = vmul.f32 %v428, 1.442695
    %v443 = vpow.pop %v442
    %v444 = vmul.f32 %v429, 1.442695
    %v445 = vpow.pop %v444
    %v446 = vsel %vm397, %v431, 0.0
    %447 = vadd.xlane.f32.xlu0 %v446
    %v448 = vpop.xlane.xlu0 %447
    %v449 = vsel %vm397, %v433, 0.0
    %450 = vadd.xlane.f32.xlu0 %v449
    %v451 = vpop.xlane.xlu0 %450
    %v452 = vsel %vm397, %v435, 0.0
    %453 = vadd.xlane.f32.xlu0 %v452
    %v454 = vpop.xlane.xlu0 %453
    %v455 = vsel %vm397, %v437, 0.0
    %456 = vadd.xlane.f32.xlu0 %v455
    %v457 = vpop.xlane.xlu0 %456
    %v458 = vsel %vm397, %v439, 0.0
    %459 = vadd.xlane.f32.xlu0 %v458
    %v460 = vpop.xlane.xlu0 %459
    %v461 = vsel %vm397, %v441, 0.0
    %462 = vadd.xlane.f32.xlu0 %v461
    %v463 = vpop.xlane.xlu0 %462
    %v464 = vsel %vm397, %v443, 0.0
    %465 = vadd.xlane.f32.xlu0 %v464
    %v466 = vpop.xlane.xlu0 %465
    %v467 = vsel %vm397, %v445, 0.0
    %468 = vadd.xlane.f32.xlu0 %v467
    %v469 = vpop.xlane.xlu0 %468
    %v470 = vrcp.pop %v448
    %v471 = vrcp.pop %v451
    %v472 = vrcp.pop %v454
    %v473 = vrcp.pop %v457
    %v474 = vrcp.pop %v460
    %v475 = vrcp.pop %v463
    %v476 = vrcp.pop %v466
    %v477 = vrcp.pop %v469
    %v478 = vmul.f32 %v431, %v470
    %v479 = vmul.f32 %v433, %v471
    %v480 = vmul.f32 %v435, %v472
    %v481 = vmul.f32 %v437, %v473
    %v482 = vmul.f32 %v439, %v474
    %v483 = vmul.f32 %v441, %v475
    %v484 = vmul.f32 %v443, %v476
    %v485 = vmul.f32 %v445, %v477
    %494 = vrot.lane.b32.xlu0 %v230, 64
    %v495 = vpop.permute.xlu0 %494
    %496 = vrot.lane.b32.xlu0 %v231, 64
    %v497 = vpop.permute.xlu0 %496
    %498 = vrot.lane.b32.xlu0 %v232, 64
    %v499 = vpop.permute.xlu0 %498
    %500 = vrot.lane.b32.xlu0 %v233, 64
    %v501 = vpop.permute.xlu0 %500
    %502 = vrot.lane.b32.xlu0 %v234, 64
    %v503 = vpop.permute.xlu0 %502
    %504 = vrot.lane.b32.xlu0 %v235, 64
    %v505 = vpop.permute.xlu0 %504
    %506 = vrot.lane.b32.xlu0 %v236, 64
    %v507 = vpop.permute.xlu0 %506
    %508 = vrot.lane.b32.xlu0 %v237, 64
    %v509 = vpop.permute.xlu0 %508
    %v519 = vsel %vm397, %v478, 0
    %v522 = vsel %vm397, %v479, 0
    %v525 = vsel %vm397, %v480, 0
    %v528 = vsel %vm397, %v481, 0
    %v531 = vsel %vm397, %v482, 0
    %v534 = vsel %vm397, %v483, 0
    %v537 = vsel %vm397, %v484, 0
    %v540 = vsel %vm397, %v485, 0
    %542 = vmatprep.subr.mxu0 0.0
    %543 = vmatpush1.msra.mxu0 0.0
    %544 = vmatprep.subr.mxu0 0.0
    %545 = vmatpush1.msra.mxu0 0.0
    %546 = vmatprep.subr.mxu0 0.0
    %547 = vmatpush1.msra.mxu0 0.0
    %548 = vmatprep.subr.mxu0 0.0
    %549 = vmatpush1.msra.mxu0 0.0
    %550 = vmatprep.subr.mxu0 0.0
    %551 = vmatpush1.msra.mxu0 0.0
    %552 = vmatprep.subr.mxu0 0.0
    %553 = vmatpush1.msra.mxu0 0.0
    %554 = vmatprep.subr.mxu0 0.0
    %555 = vmatpush1.msra.mxu0 0.0
    %556 = vmatprep.subr.mxu0 0.0
    %557 = vmatpush1.msra.mxu0 0.0
    %558 = vmatprep.subr.mxu0 0.0
    %559 = vmatpush1.msra.mxu0 %v509
    %560 = vmatprep.subr.mxu0 0.0
    %561 = vmatpush1.msra.mxu0 %v507
    %562 = vmatprep.subr.mxu0 0.0
    %563 = vmatpush1.msra.mxu0 %v505
    %564 = vmatprep.subr.mxu0 0.0
    %565 = vmatpush1.msra.mxu0 %v503
    %566 = vmatprep.subr.mxu0 0.0
    %567 = vmatpush1.msra.mxu0 %v501
    %568 = vmatprep.subr.mxu0 0.0
    %569 = vmatpush1.msra.mxu0 %v499
    %570 = vmatprep.subr.mxu0 0.0
    %571 = vmatpush1.msra.mxu0 %v497
    %572 = vmatprep.subr.mxu0 0.0
    %573 = vmatpush1.msra.mxu0 %v495
    %574 = vmatprep.subr.mxu0 0.0
    %575 = vmatpush2.msra.mxu0 0.0
    %576 = vmatprep.subr.mxu0 0.0
    %577 = vmatpush2.msra.mxu0 0.0
    %578 = vmatprep.subr.mxu0 0.0
    %579 = vmatpush2.msra.mxu0 0.0
    %580 = vmatprep.subr.mxu0 0.0
    %581 = vmatpush2.msra.mxu0 0.0
    %582 = vmatprep.subr.mxu0 0.0
    %583 = vmatpush2.msra.mxu0 0.0
    %584 = vmatprep.subr.mxu0 0.0
    %585 = vmatpush2.msra.mxu0 0.0
    %586 = vmatprep.subr.mxu0 0.0
    %587 = vmatpush2.msra.mxu0 0.0
    %588 = vmatprep.subr.mxu0 0.0
    %589 = vmatpush2.msra.mxu0 0.0
    %590 = vmatprep.subr.mxu0 0.0
    %591 = vmatpush2.msra.mxu0 0.0
    %592 = vmatprep.subr.mxu0 0.0
    %593 = vmatpush2.msra.mxu0 0.0
    %594 = vmatprep.subr.mxu0 0.0
    %595 = vmatpush2.msra.mxu0 0.0
    %596 = vmatprep.subr.mxu0 0.0
    %597 = vmatpush2.msra.mxu0 0.0
    %598 = vmatprep.subr.mxu0 0.0
    %599 = vmatpush2.msra.mxu0 0.0
    %600 = vmatprep.subr.mxu0 0.0
    %601 = vmatpush2.msra.mxu0 0.0
    %602 = vmatprep.subr.mxu0 0.0
    %603 = vmatpush2.msra.mxu0 0.0
    %604 = vmatprep.subr.mxu0 0.0
    %605 = vmatpush2.msra.mxu0 0.0
    %606 = vmatprep.mubr.f32.mxu0 0.0
    %607 = vmatmul.mubr.f32.gmra.mxu0 %v519
    %v608 = vpop.f32.mrf.mxu0
    %v609 = vadd.f32 0.0, %v608
    %v610 = vpop.f32.mrf.mxu0
    %611 = vmatprep.mubr.f32.mxu0 0.0
    %612 = vmatmul.mubr.f32.gmra.mxu0 %v522
    %v613 = vpop.f32.mrf.mxu0
    %v614 = vadd.f32 0.0, %v613
    %v615 = vpop.f32.mrf.mxu0
    %616 = vmatprep.mubr.f32.mxu0 0.0
    %617 = vmatmul.mubr.f32.gmra.mxu0 %v525
    %v618 = vpop.f32.mrf.mxu0
    %v619 = vadd.f32 0.0, %v618
    %v620 = vpop.f32.mrf.mxu0
    %621 = vmatprep.mubr.f32.mxu0 0.0
    %622 = vmatmul.mubr.f32.gmra.mxu0 %v528
    %v623 = vpop.f32.mrf.mxu0
    %v624 = vadd.f32 0.0, %v623
    %v625 = vpop.f32.mrf.mxu0
    %626 = vmatprep.mubr.f32.mxu0 0.0
    %627 = vmatmul.mubr.f32.gmra.mxu0 %v531
    %v628 = vpop.f32.mrf.mxu0
    %v629 = vadd.f32 0.0, %v628
    %v630 = vpop.f32.mrf.mxu0
    %631 = vmatprep.mubr.f32.mxu0 0.0
    %632 = vmatmul.mubr.f32.gmra.mxu0 %v534
    %v633 = vpop.f32.mrf.mxu0
    %v634 = vadd.f32 0.0, %v633
    %v635 = vpop.f32.mrf.mxu0
    %636 = vmatprep.mubr.f32.mxu0 0.0
    %637 = vmatmul.mubr.f32.gmra.mxu0 %v537
    %v638 = vpop.f32.mrf.mxu0
    %v639 = vadd.f32 0.0, %v638
    %v640 = vpop.f32.mrf.mxu0
    %641 = vmatprep.mubr.f32.mxu0 0.0
    %642 = vmatmul.mubr.f32.gmra.mxu0 %v540
    %v643 = vpop.f32.mrf.mxu0
    %v644 = vadd.f32 0.0, %v643
    %v645 = vpop.f32.mrf.mxu0
    %646 = vdwg.mxu0
    %v647 = vadd.f32 %v609, %v619
    %v648 = vadd.f32 %v614, %v624
    %v649 = vadd.f32 %v647, %v629
    %v650 = vadd.f32 %v648, %v634
    %v651 = vadd.f32 %v649, %v639
    %v652 = vadd.f32 %v650, %v644
    %v653 = vld [vmem:[%s5] sm:$0xff]
    %v654 = vld [vmem:[%s5 + $0x8] sm:$0xff]
    %v655 = vld [vmem:[%s5 + $0x10] sm:$0xff]
    %v656 = vld [vmem:[%s5 + $0x18] sm:$0xff]
    %v657 = vld [vmem:[%s6] sm:$0x1]
    %v659 = vlaneseq
    %v660 = vshrl.u32 %v659, 7
    %v661 = vsub.s32 0, %v660
    %v662 = vrot.slane %v657, %v661
    %v665 = vsel %vm44, %v651, 0
    %v668 = vsel %vm44, %v652, 0
    %670 = vmatprep.subr.mxu0 0.0
    %671 = vmatpush1.msra.mxu0 0.0
    %672 = vmatprep.subr.mxu0 0.0
    %673 = vmatpush1.msra.mxu0 0.0
    %674 = vmatprep.subr.mxu0 0.0
    %675 = vmatpush1.msra.mxu0 0.0
    %676 = vmatprep.subr.mxu0 0.0
    %677 = vmatpush1.msra.mxu0 0.0
    %678 = vmatprep.subr.mxu0 0.0
    %679 = vmatpush1.msra.mxu0 0.0
    %680 = vmatprep.subr.mxu0 0.0
    %681 = vmatpush1.msra.mxu0 0.0
    %682 = vmatprep.subr.mxu0 0.0
    %683 = vmatpush1.msra.mxu0 0.0
    %684 = vmatprep.subr.mxu0 0.0
    %685 = vmatpush1.msra.mxu0 0.0
    %686 = vmatprep.subr.mxu0 0.0
    %687 = vmatpush1.msra.mxu0 0.0
    %688 = vmatprep.subr.mxu0 0.0
    %689 = vmatpush1.msra.mxu0 0.0
    %690 = vmatprep.subr.mxu0 0.0
    %691 = vmatpush1.msra.mxu0 0.0
    %692 = vmatprep.subr.mxu0 0.0
    %693 = vmatpush1.msra.mxu0 0.0
    %694 = vmatprep.subr.mxu0 0.0
    %695 = vmatpush1.msra.mxu0 %v656
    %696 = vmatprep.subr.mxu0 0.0
    %697 = vmatpush1.msra.mxu0 %v655
    %698 = vmatprep.subr.mxu0 0.0
    %699 = vmatpush1.msra.mxu0 %v654
    %700 = vmatprep.subr.mxu0 0.0
    %701 = vmatpush1.msra.mxu0 %v653
    %702 = vmatprep.subr.mxu0 0.0
    %703 = vmatpush2.msra.mxu0 0.0
    %704 = vmatprep.subr.mxu0 0.0
    %705 = vmatpush2.msra.mxu0 0.0
    %706 = vmatprep.subr.mxu0 0.0
    %707 = vmatpush2.msra.mxu0 0.0
    %708 = vmatprep.subr.mxu0 0.0
    %709 = vmatpush2.msra.mxu0 0.0
    %710 = vmatprep.subr.mxu0 0.0
    %711 = vmatpush2.msra.mxu0 0.0
    %712 = vmatprep.subr.mxu0 0.0
    %713 = vmatpush2.msra.mxu0 0.0
    %714 = vmatprep.subr.mxu0 0.0
    %715 = vmatpush2.msra.mxu0 0.0
    %716 = vmatprep.subr.mxu0 0.0
    %717 = vmatpush2.msra.mxu0 0.0
    %718 = vmatprep.subr.mxu0 0.0
    %719 = vmatpush2.msra.mxu0 0.0
    %720 = vmatprep.subr.mxu0 0.0
    %721 = vmatpush2.msra.mxu0 0.0
    %722 = vmatprep.subr.mxu0 0.0
    %723 = vmatpush2.msra.mxu0 0.0
    %724 = vmatprep.subr.mxu0 0.0
    %725 = vmatpush2.msra.mxu0 0.0
    %726 = vmatprep.subr.mxu0 0.0
    %727 = vmatpush2.msra.mxu0 0.0
    %728 = vmatprep.subr.mxu0 0.0
    %729 = vmatpush2.msra.mxu0 0.0
    %730 = vmatprep.subr.mxu0 0.0
    %731 = vmatpush2.msra.mxu0 0.0
    %732 = vmatprep.subr.mxu0 0.0
    %733 = vmatpush2.msra.mxu0 0.0
    %734 = vmatprep.mubr.f32.mxu0 0.0
    %735 = vmatmul.mubr.f32.gmra.mxu0 %v665
    %v736 = vpop.f32.mrf.mxu0
    %v737 = vadd.f32 %v662, %v736
    %v738 = vpop.f32.mrf.mxu0
    %739 = vmatprep.mubr.f32.mxu0 0.0
    %740 = vmatmul.mubr.f32.gmra.mxu0 %v668
    %v741 = vpop.f32.mrf.mxu0
    %v742 = vadd.f32 %v662, %v741
    %v743 = vpop.f32.mrf.mxu0
    %744 = vdwg.mxu0
    %745 = vst.msk [vmem:[#allocation2] sm:$0xff] %vm44, %v737
    %746 = vst.msk [vmem:[#allocation2 + $0x8] sm:$0xff] %vm44, %v742
    // Predicated region
    $region30: #{attention_pallas.1} parent=1 // pred_check
      _
    $region31: #{attention_pallas.1} parent=1 // pred_check_branch
      %748 = sbr.rel (0) target = $region33
    $region32: #{attention_pallas.1} parent=1 // pred_region
      %s750 = ssub.s32 256, 256
      %751 = vsyncadd [#allocation3], %s750
      %s752 = sshll.u32 [#allocation2], 4
      %s753 = int_to_ptr.vmem [resolvable:$true] %s752
      %758 = dma.vmem_to_hbm [thread:$0]  %s753, 256, %s7, [#allocation3], 128, 128, 8
    $region33: #{attention_pallas.1} parent=1 // pred_fallthru
      _
    // Predicated region
    $region34: #{attention_pallas.1} parent=1 // pred_check
      _
    $region35: #{attention_pallas.1} parent=1 // pred_check_branch
      %760 = sbr.rel (0) target = $region37
    $region36: #{attention_pallas.1} parent=1 // pred_region
      %761 = dma.done [#allocation3], 256
    $region37: #{attention_pallas.1} parent=1 // pred_fallthru
      _
    %762 = vsyncpa [#allocation3], 1

</llo_original>
